<compile_context>
chip_gen: v7x
topology: tpu7x:2x2x1
jax: 0.10.0
libtpu: 0.0.40
codegen_flags: <defaults>
</compile_context>

<pallas_src>
import jax
import jax.numpy as jnp
from jax.experimental import pallas as pl
from jax.experimental.pallas import tpu as pltpu

LANES = 128      # TPU lane count (fast axis)
SUB_ROWS = 512   # compute sub-chunk rows: bounds intermediate VMEM/vreg
                 # pressure independently of the DMA block size.

LOSS_NAMES = ("seg_bce", "crossfield_align", "seg_edge")
LOSS_WEIGHTS = (1.0, 0.25, 0.5)   # MultiLoss.__init__ weights (constant floats)


def _cdiv(a, b):
    return -(-a // b)


def _chip_tiling():
    """(num_slices, max_tile_rows, vmem_limit_bytes) per TPU generation.

    v7x: 64 MiB VMEM / TC, 2 TCs, 3.2 TB/s -> 2 parallel slices, 4 MiB f32
    DMA blocks.  v5e/v6e: single TC; 2 MiB blocks already sit near the HBM
    roofline there.
    """
    try:
        vmem_bytes = int(pltpu.get_tpu_info().vmem_capacity_bytes)
    except Exception:                      # unknown chip / interpret mode
        return 1, 4096, 32 * 1024 * 1024   # conservative, correct everywhere
    if vmem_bytes <= (96 << 20):           # v7x-class core (64 MiB VMEM)
        return 2, 8192, 48 * 1024 * 1024
    return 1, 4096, 32 * 1024 * 1024       # v5e / v6e


def _elementwise_losses(p, g):
    """Per-element loss formulas shared by kernel and pure-JAX tail (f32)."""
    # Numerically stable BCE-with-logits: max(p,0) - p*g + log(1 + exp(-|p|))
    bce = jnp.maximum(p, 0.0) - p * g + jnp.log1p(jnp.exp(-jnp.abs(p)))
    diff = p - g
    return bce, diff * diff, jnp.abs(diff)


def _build_kernel(tile_r):
    """Kernel over grid (num_slices, num_tiles); resident acc block (1,3,8,128)."""

    def kernel(pred_ref, gt_ref, acc_ref):
        @pl.when(pl.program_id(1) == 0)
        def _init():
            acc_ref[...] = jnp.zeros_like(acc_ref)

        def accumulate(row0, nrows):
            # Load only a SUB_ROWS-sized chunk of the (tile_r, 128) DMA block.
            p = pred_ref[pl.ds(row0, nrows), :].astype(jnp.float32)
            g = gt_ref[pl.ds(row0, nrows), :].astype(jnp.float32)
            bce, mse, l1 = _elementwise_losses(p, g)

            def fold(x):  # (nrows, 128) -> (8, 128): pure VPU adds
                return x.reshape(nrows // 8, 8, LANES).sum(axis=0)

            # Direct slab updates (no stacked (3,8,128) intermediate).
            acc_ref[0, 0] += fold(bce)
            acc_ref[0, 1] += fold(mse)
            acc_ref[0, 2] += fold(l1)

        # Fully unrolled, small static trip count (<= max_tile_rows/SUB_ROWS).
        n_full, rem = divmod(tile_r, SUB_ROWS)
        for c in range(n_full):
            accumulate(c * SUB_ROWS, SUB_ROWS)
        if rem:
            accumulate(n_full * SUB_ROWS, rem)

    return kernel


def _multi_loss_jax_sums(pred, gt):
    """Fused pure-JAX reduction for tiny inputs / ragged tails. Returns (3,)."""
    p = pred.astype(jnp.float32)
    g = gt.astype(jnp.float32)
    bce, mse, l1 = _elementwise_losses(p, g)
    return jnp.stack([jnp.sum(bce), jnp.sum(mse), jnp.sum(l1)])


def _multi_loss_pallas_sums(pred, gt):
    """Returns per-loss elementwise sums over the whole tensors, shape (3,), f32."""
    n_elems = pred.size
    itemsize = jnp.dtype(pred.dtype).itemsize
    sublane_min = 8 * max(1, 4 // itemsize)   # 8 for f32, 16 for bf16, 32 for i8

    num_slices, max_tile_rows, vmem_limit = _chip_tiling()

    rows = n_elems // LANES
    slice_rows = rows // num_slices
    num_tiles = max(1, _cdiv(slice_rows, max_tile_rows))
    tile_r = (slice_rows // num_tiles) // sublane_min * sublane_min
    if tile_r == 0:
        # Too small to tile; fused XLA reduction handles it.
        return _multi_loss_jax_sums(pred, gt)

    main_rows = num_slices * num_tiles * tile_r   # rows covered by the grid
    main_elems = main_rows * LANES

    p_flat = pred.reshape(-1)
    g_flat = gt.reshape(-1)

    if n_elems % LANES == 0:
        # Free reshape, zero copies: the grid simply never reads rows beyond
        # main_rows (no pad, no prefix slice).
        p2 = p_flat.reshape(rows, LANES)
        g2 = g_flat.reshape(rows, LANES)
    else:
        # TODO(synk): for element counts not divisible by 128 this prefix
        # slice is one extra HBM copy; a fully zero-copy path would need a
        # manual 1-D DMA kernel (memory_space=pl.ANY).
        p2 = jax.lax.slice(p_flat, (0,), (main_elems,)).reshape(main_rows, LANES)
        g2 = jax.lax.slice(g_flat, (0,), (main_elems,)).reshape(main_rows, LANES)

    kernel = _build_kernel(tile_r)

    partials = pl.pallas_call(
        kernel,
        out_shape=jax.ShapeDtypeStruct((num_slices, 3, 8, LANES), jnp.float32),
        grid_spec=pltpu.PrefetchScalarGridSpec(
            num_scalar_prefetch=0,
            grid=(num_slices, num_tiles),
            in_specs=[
                pl.BlockSpec((tile_r, LANES), lambda s, k: (s * num_tiles + k, 0)),
                pl.BlockSpec((tile_r, LANES), lambda s, k: (s * num_tiles + k, 0)),
            ],
            out_specs=pl.BlockSpec((1, 3, 8, LANES), lambda s, k: (s, 0, 0, 0)),
        ),
        compiler_params=pltpu.CompilerParams(
            dimension_semantics=("parallel", "arbitrary"),
            vmem_limit_bytes=vmem_limit,
        ),
    )(p2, g2)

    # Tiny glue: collapse partial-sum slabs (slices, 3, 8, 128) -> (3,)
    sums = jnp.sum(partials, axis=(0, 2, 3))

    if main_elems < n_elems:
        # Ragged tail (< one DMA block + 128 elems): fused XLA reduction.
        sums = sums + _multi_loss_jax_sums(p_flat[main_elems:], g_flat[main_elems:])
    return sums


def multi_loss(pred, gt, weights=LOSS_WEIGHTS, normalize=True,
               min_pallas_elems=1 << 20):
    """Forward pass of MultiLoss.

    Returns (total_loss, individual_losses_dict, extra_dict), mirroring the
    PyTorch module's forward signature/semantics.
    """
    assert pred.shape == gt.shape
    n_elems = pred.size

    if n_elems < min_pallas_elems:
        sums = _multi_loss_jax_sums(pred, gt)
    else:
        sums = _multi_loss_pallas_sums(pred, gt)

    losses = sums / n_elems if normalize else sums            # per-loss values
    individual_losses_dict = {name: losses[i] for i, name in enumerate(LOSS_NAMES)}
    w = jnp.asarray(weights, jnp.float32)
    total_loss = jnp.sum(w * losses)
    extra_dict = {name: {} for name in LOSS_NAMES}
    return total_loss, individual_losses_dict, extra_dict


def _reference(pred, gt, weights=LOSS_WEIGHTS):
    p = pred.astype(jnp.float32)
    g = gt.astype(jnp.float32)
    bce, mse, l1 = _elementwise_losses(p, g)
    losses = jnp.stack([jnp.mean(bce), jnp.mean(mse), jnp.mean(l1)])
    return jnp.sum(jnp.asarray(weights, jnp.float32) * losses), losses


def _check(pred, gt, rtol, atol, min_pallas_elems=0):
    total, individual, _ = multi_loss(pred, gt, min_pallas_elems=min_pallas_elems)
    total = jax.block_until_ready(total)
    ref_total, ref_losses = _reference(pred, gt)
    assert jnp.allclose(total, ref_total, rtol=rtol, atol=atol)
    for i, name in enumerate(LOSS_NAMES):
        assert jnp.allclose(individual[name], ref_losses[i], rtol=rtol, atol=atol)


if __name__ == "__main__":
    key = jax.random.PRNGKey(0)
    k_pred, k_gt = jax.random.split(key)

    # 1) NCHW, divisible-by-128 case: zero-copy path, full coverage.
    pred = jax.random.normal(k_pred, (2, 4, 16, 16), dtype=jnp.float32)
    gt = (jax.random.uniform(k_gt, (2, 4, 16, 16)) > 0.5).astype(jnp.float32)
    _check(pred, gt, rtol=1e-5, atol=1e-5, min_pallas_elems=0)

    # 2) bf16, size NOT divisible by 128: exercises prefix + pure-JAX tail.
    pred2 = jax.random.normal(k_pred, (2, 4, 33, 35), dtype=jnp.bfloat16)
    gt2 = (jax.random.uniform(k_gt, (2, 4, 33, 35)) > 0.5).astype(jnp.bfloat16)
    _check(pred2, gt2, rtol=1e-4, atol=1e-4, min_pallas_elems=0)

    # 3) divisible by 128 but ragged row count: grid leaves uncovered tail rows
    #    (no pad, no slice) which are reduced by the pure-JAX tail path.
    pred3 = jax.random.normal(k_pred, (5, 13, 128), dtype=jnp.float32)
    gt3 = (jax.random.uniform(k_gt, (5, 13, 128)) > 0.5).astype(jnp.float32)
    _check(pred3, gt3, rtol=1e-5, atol=1e-5, min_pallas_elems=0)

    # 4) default dispatch: tiny input falls back to the fused pure-JAX path.
    _check(pred, gt, rtol=1e-5, atol=1e-5, min_pallas_elems=1 << 20)

    print("KERNEL_OK")
</pallas_src>

<mosaic_0001>
module attributes {stable_mosaic.version = 11 : i64} {
  func.func @kernel(%arg0: i32, %arg1: i32, %arg2: memref<16x128xf32, #tpu.memory_space<vmem>>, %arg3: memref<16x128xf32, #tpu.memory_space<vmem>>, %arg4: memref<1x3x8x128xf32, #tpu.memory_space<vmem>>) attributes {dimension_semantics = [#tpu.dimension_semantics<parallel>, #tpu.dimension_semantics<arbitrary>], iteration_bounds = array<i64: 1, 1>, scalar_prefetch = 0 : i64, scratch_operands = 0 : i64, tpu.core_type = #tpu.core_type<tc>, window_params = [{transform_indices = @transform_0, window_bounds = array<i64: 16, 128>}, {transform_indices = @transform_1, window_bounds = array<i64: 16, 128>}, {transform_indices = @transform_2, window_bounds = array<i64: 1, 3, 8, 128>}]} {
    %c0_i32 = arith.constant 0 : i32
    %0 = arith.cmpi eq, %arg1, %c0_i32 : i32
    %1 = arith.extui %0 : i1 to i32
    %c0_i32_0 = arith.constant 0 : i32
    %2 = arith.cmpi ne, %1, %c0_i32_0 : i32
    scf.if %2 {
      %cst_30 = arith.constant 0.000000e+00 : f32
      %42 = vector.broadcast %cst_30 : f32 to vector<1x3x8x128xf32>
      %c0_31 = arith.constant 0 : index
      %c0_32 = arith.constant 0 : index
      %c0_33 = arith.constant 0 : index
      %c0_34 = arith.constant 0 : index
      %43 = vector.load %arg4[%c0_31, %c0_32, %c0_33, %c0_34] : memref<1x3x8x128xf32, #tpu.memory_space<vmem>>, vector<1x3x8x128xf32>
      tpu.vector_store %arg4[%c0_31, %c0_32, %c0_33, %c0_34], %42 {strides = array<i32>} : memref<1x3x8x128xf32, #tpu.memory_space<vmem>>, vector<1x3x8x128xf32>,
    } else {
    }
    %c0 = arith.constant 0 : index
    %c0_1 = arith.constant 0 : index
    %3 = vector.load %arg2[%c0, %c0_1] : memref<16x128xf32, #tpu.memory_space<vmem>>, vector<16x128xf32>
    %c0_2 = arith.constant 0 : index
    %c0_3 = arith.constant 0 : index
    %4 = vector.load %arg3[%c0_2, %c0_3] : memref<16x128xf32, #tpu.memory_space<vmem>>, vector<16x128xf32>
    %cst = arith.constant 0.000000e+00 : f32
    %5 = vector.broadcast %cst : f32 to vector<16x128xf32>
    %6 = arith.maximumf %3, %5 : vector<16x128xf32>
    %7 = arith.mulf %3, %4 : vector<16x128xf32>
    %8 = arith.subf %6, %7 : vector<16x128xf32>
    %9 = math.absf %3 : vector<16x128xf32>
    %cst_4 = arith.constant 0.000000e+00 : f32
    %10 = vector.broadcast %cst_4 : f32 to vector<16x128xf32>
    %11 = arith.subf %10, %9 : vector<16x128xf32>
    %12 = math.exp %11 : vector<16x128xf32>
    %13 = math.log1p %12 : vector<16x128xf32>
    %14 = arith.addf %8, %13 : vector<16x128xf32>
    %15 = arith.subf %3, %4 : vector<16x128xf32>
    %16 = arith.mulf %15, %15 : vector<16x128xf32>
    %17 = math.absf %15 : vector<16x128xf32>
    %c0_5 = arith.constant 0 : index
    %c0_6 = arith.constant 0 : index
    %c0_7 = arith.constant 0 : index
    %c0_8 = arith.constant 0 : index
    %18 = vector.load %arg4[%c0_5, %c0_6, %c0_7, %c0_8] : memref<1x3x8x128xf32, #tpu.memory_space<vmem>>, vector<1x1x8x128xf32>
    %19 = vector.shape_cast %18 : vector<1x1x8x128xf32> to vector<8x128xf32>
    %20 = vector.shape_cast %14 : vector<16x128xf32> to vector<2x8x128xf32>
    %cst_9 = arith.constant dense<0.000000e+00> : vector<8x128xf32>
    %21 = vector.multi_reduction <add>, %20, %cst_9 [0] : vector<2x8x128xf32> to vector<8x128xf32>
    %22 = arith.addf %19, %21 : vector<8x128xf32>
    %c0_10 = arith.constant 0 : index
    %c0_11 = arith.constant 0 : index
    %c0_12 = arith.constant 0 : index
    %c0_13 = arith.constant 0 : index
    %23 = vector.load %arg4[%c0_10, %c0_11, %c0_12, %c0_13] : memref<1x3x8x128xf32, #tpu.memory_space<vmem>>, vector<1x1x8x128xf32>
    %24 = vector.shape_cast %23 : vector<1x1x8x128xf32> to vector<8x128xf32>
    %25 = vector.shape_cast %22 : vector<8x128xf32> to vector<1x1x8x128xf32>
    tpu.vector_store %arg4[%c0_10, %c0_11, %c0_12, %c0_13], %25 {strides = array<i32>} : memref<1x3x8x128xf32, #tpu.memory_space<vmem>>, vector<1x1x8x128xf32>,
    %c0_14 = arith.constant 0 : index
    %c1 = arith.constant 1 : index
    %c0_15 = arith.constant 0 : index
    %c0_16 = arith.constant 0 : index
    %26 = vector.load %arg4[%c0_14, %c1, %c0_15, %c0_16] : memref<1x3x8x128xf32, #tpu.memory_space<vmem>>, vector<1x1x8x128xf32>
    %27 = vector.shape_cast %26 : vector<1x1x8x128xf32> to vector<8x128xf32>
    %28 = vector.shape_cast %16 : vector<16x128xf32> to vector<2x8x128xf32>
    %cst_17 = arith.constant dense<0.000000e+00> : vector<8x128xf32>
    %29 = vector.multi_reduction <add>, %28, %cst_17 [0] : vector<2x8x128xf32> to vector<8x128xf32>
    %30 = arith.addf %27, %29 : vector<8x128xf32>
    %c0_18 = arith.constant 0 : index
    %c1_19 = arith.constant 1 : index
    %c0_20 = arith.constant 0 : index
    %c0_21 = arith.constant 0 : index
    %31 = vector.load %arg4[%c0_18, %c1_19, %c0_20, %c0_21] : memref<1x3x8x128xf32, #tpu.memory_space<vmem>>, vector<1x1x8x128xf32>
    %32 = vector.shape_cast %31 : vector<1x1x8x128xf32> to vector<8x128xf32>
    %33 = vector.shape_cast %30 : vector<8x128xf32> to vector<1x1x8x128xf32>
    tpu.vector_store %arg4[%c0_18, %c1_19, %c0_20, %c0_21], %33 {strides = array<i32>} : memref<1x3x8x128xf32, #tpu.memory_space<vmem>>, vector<1x1x8x128xf32>,
    %c0_22 = arith.constant 0 : index
    %c2 = arith.constant 2 : index
    %c0_23 = arith.constant 0 : index
    %c0_24 = arith.constant 0 : index
    %34 = vector.load %arg4[%c0_22, %c2, %c0_23, %c0_24] : memref<1x3x8x128xf32, #tpu.memory_space<vmem>>, vector<1x1x8x128xf32>
    %35 = vector.shape_cast %34 : vector<1x1x8x128xf32> to vector<8x128xf32>
    %36 = vector.shape_cast %17 : vector<16x128xf32> to vector<2x8x128xf32>
    %cst_25 = arith.constant dense<0.000000e+00> : vector<8x128xf32>
    %37 = vector.multi_reduction <add>, %36, %cst_25 [0] : vector<2x8x128xf32> to vector<8x128xf32>
    %38 = arith.addf %35, %37 : vector<8x128xf32>
    %c0_26 = arith.constant 0 : index
    %c2_27 = arith.constant 2 : index
    %c0_28 = arith.constant 0 : index
    %c0_29 = arith.constant 0 : index
    %39 = vector.load %arg4[%c0_26, %c2_27, %c0_28, %c0_29] : memref<1x3x8x128xf32, #tpu.memory_space<vmem>>, vector<1x1x8x128xf32>
    %40 = vector.shape_cast %39 : vector<1x1x8x128xf32> to vector<8x128xf32>
    %41 = vector.shape_cast %38 : vector<8x128xf32> to vector<1x1x8x128xf32>
    tpu.vector_store %arg4[%c0_26, %c2_27, %c0_28, %c0_29], %41 {strides = array<i32>} : memref<1x3x8x128xf32, #tpu.memory_space<vmem>>, vector<1x1x8x128xf32>,
    return
  }
  func.func @transform_0(%arg0: i32, %arg1: i32) -> (i32, i32) {
    %c1_i32 = arith.constant 1 : i32
    %0 = arith.muli %arg0, %c1_i32 : i32
    %1 = arith.addi %0, %arg1 : i32
    %c0_i32 = arith.constant 0 : i32
    %c0_i32_0 = arith.constant 0 : i32
    return %1, %c0_i32 : i32, i32
  }
  func.func @transform_1(%arg0: i32, %arg1: i32) -> (i32, i32) {
    %c1_i32 = arith.constant 1 : i32
    %0 = arith.muli %arg0, %c1_i32 : i32
    %1 = arith.addi %0, %arg1 : i32
    %c0_i32 = arith.constant 0 : i32
    %c0_i32_0 = arith.constant 0 : i32
    return %1, %c0_i32 : i32, i32
  }
  func.func @transform_2(%arg0: i32, %arg1: i32) -> (i32, i32, i32, i32) {
    %c0_i32 = arith.constant 0 : i32
    %c0_i32_0 = arith.constant 0 : i32
    %c0_i32_1 = arith.constant 0 : i32
    %c0_i32_2 = arith.constant 0 : i32
    return %arg0, %c0_i32, %c0_i32_0, %c0_i32_1 : i32, i32, i32, i32
  }
}

</mosaic_0001>

<llo_original>
// kernel: tpu_custom_call.1
$region0: #{tpu_custom_call.1}
  #allocation0 [shape = 'u32[]', space=smem, size = 0x4, offset = 0x4, fixed_abs, tag = 'smem constant byte address 0x4 - core index']
  #allocation1 [shape = 'u32[144,128]{1,0:T(1,128)}', space=vmem, size = 0x12000, scoped, tag = 'internal scratch']
  %s0 = inlined_call_operand.hbm [shape: f32[16,128], index: 0, kind: input, shape index: {}]
  %s1 = inlined_call_operand.hbm [shape: f32[16,128], index: 1, kind: input, shape index: {}]
  %s2 = inlined_call_operand.hbm [shape: f32[1,3,8,128], index: 2, kind: output, shape index: {}]
  %s3 = sld [smem:[#allocation0]]
  $region30: #{tpu_custom_call.1} parent=0
    _
  %s5 = ssub.s32 1, %s3
  %s6 = scalar_select 0, %s5, %s3
  $region1: #{tpu_custom_call.1} parent=0
    #allocation2 [shape = 'u8[8192]{0}', space=vmem, size = 0x2000, scoped, tag = 'input window, operand 0, single buffered']
    #allocation3 [shape = 's32[1]{0}', space=sflag, size = 0x4, scoped, tag = 'scoped memory for tpu_custom_call.1']
    #allocation4 [shape = 's32[1]{0}', space=sflag, size = 0x4, scoped, tag = 'scoped memory for tpu_custom_call.1']
    #allocation5 [shape = 'u8[8192]{0}', space=vmem, size = 0x2000, scoped, tag = 'input window, operand 1, single buffered']
    #allocation6 [shape = 's32[1]{0}', space=sflag, size = 0x4, scoped, tag = 'scoped memory for tpu_custom_call.1']
    #allocation7 [shape = 'u8[12288]{0}', space=vmem, size = 0x3000, scoped, tag = 'output window, operand 0, single buffered']
    %7 = vsyncpa [#allocation3], 0
    %8 = vsyncpa [#allocation6], 0
    %9 = vsyncpa [#allocation4], 0
    // Predicated region
    $region2: #{tpu_custom_call.1} parent=1 // pred_check
      _
    $region3: #{tpu_custom_call.1} parent=1 // pred_check_branch
      %11 = sbr.rel (0) target = $region5
    $region4: #{tpu_custom_call.1} parent=1 // pred_region
      %s12 = sadd.s32 0, 0
      %s13 = smul.u32 2, %s12
      %s15 = ssub.s32 256, 256
      %16 = vsyncadd [#allocation3], %s15
      %s17 = smul.addr %s13, 128
      %s18 = scalar_lea.hbm %s0, %s17
      %s19 = sshll.u32 [#allocation2], 4
      %s20 = int_to_ptr.vmem [resolvable:$true] %s19
      %25 = dma.hbm_to_vmem [thread:$0]  %s18, 256, %s20, [#allocation3], 128, 128, 8
    $region5: #{tpu_custom_call.1} parent=1 // pred_fallthru
      _
    // Predicated region
    $region6: #{tpu_custom_call.1} parent=1 // pred_check
      _
    $region7: #{tpu_custom_call.1} parent=1 // pred_check_branch
      %27 = sbr.rel (0) target = $region9
    $region8: #{tpu_custom_call.1} parent=1 // pred_region
      %s28 = sadd.s32 0, 0
      %s29 = smul.u32 2, %s28
      %s31 = ssub.s32 256, 256
      %32 = vsyncadd [#allocation6], %s31
      %s33 = smul.addr %s29, 128
      %s34 = scalar_lea.hbm %s1, %s33
      %s35 = sshll.u32 [#allocation5], 4
      %s36 = int_to_ptr.vmem [resolvable:$true] %s35
      %41 = dma.hbm_to_vmem [thread:$0]  %s34, 256, %s36, [#allocation6], 128, 128, 8
    $region9: #{tpu_custom_call.1} parent=1 // pred_fallthru
      _
    // Predicated region
    $region10: #{tpu_custom_call.1} parent=1 // pred_check
      _
    $region11: #{tpu_custom_call.1} parent=1 // pred_check_branch
      %43 = sbr.rel (0) target = $region13
    $region12: #{tpu_custom_call.1} parent=1 // pred_region
      %44 = dma.done [#allocation3], 256
    $region13: #{tpu_custom_call.1} parent=1 // pred_fallthru
      _
    // Predicated region
    $region14: #{tpu_custom_call.1} parent=1 // pred_check
      _
    $region15: #{tpu_custom_call.1} parent=1 // pred_check_branch
      %46 = sbr.rel (0) target = $region17
    $region16: #{tpu_custom_call.1} parent=1 // pred_region
      %47 = dma.done [#allocation6], 256
    $region17: #{tpu_custom_call.1} parent=1 // pred_fallthru
      _
    %s48 = sadd.s32 0, 0
    %s49 = smul.u32 2, %s48
    %s50 = sadd.s32 0, 0
    %s51 = smul.u32 2, %s50
    %p52 = scmp.eq.s32.totalorder 0, 0
    // Predicated region
    $region18: #{tpu_custom_call.1} parent=1 // pred_check
      %p53 = pneg %p52
    $region19: #{tpu_custom_call.1} parent=1 // pred_check_branch
      %55 = sbr.rel (%p53) target = $region21
    $region20: #{tpu_custom_call.1} parent=1 // pred_region
      %56 = vst [vmem:[#allocation7] sm:$0xff] 0.0
      %57 = vst [vmem:[#allocation7 + $0x8] sm:$0xff] 0.0
      %58 = vst [vmem:[#allocation7 + $0x10] sm:$0xff] 0.0
    $region21: #{tpu_custom_call.1} parent=1 // pred_fallthru
      _
    %v59 = vld [vmem:[#allocation2] sm:$0xff]
    %v60 = vld [vmem:[#allocation2 + $0x8] sm:$0xff]
    %v61 = vld [vmem:[#allocation5] sm:$0xff]
    %v62 = vld [vmem:[#allocation5 + $0x8] sm:$0xff]
    %v63 = vmax.f32 %v59, 0.0
    %v64 = vmax.f32 %v60, 0.0
    %v65 = vmul.f32 %v59, %v61
    %v66 = vmul.f32 %v60, %v62
    %v67 = vsub.f32 %v63, %v65
    %v68 = vsub.f32 %v64, %v66
    %v69 = vand.u32 2147483647, %v59
    %v70 = vand.u32 2147483647, %v60
    %v71 = vsub.f32 0.0, %v69
    %v72 = vsub.f32 0.0, %v70
    %v73 = vmul.f32 %v71, 1.442695
    %v74 = vpow.pop %v73
    %v75 = vmul.f32 %v72, 1.442695
    %v76 = vpow.pop %v75
    %v77 = vadd.f32 %v74, 1.0
    %v78 = vlog2.pop %v77
    %v79 = vmul.f32 %v78, 0.6931472
    %v80 = vmul.f32 -0.5, %v74
    %v81 = vadd.f32 %v80, 1.0
    %v82 = vmul.f32 %v81, %v74
    %v83 = vand.u32 2147483647, %v74
    %vm84 = vcmp.lt.f32.partialorder %v83, 0.0004427343
    %v85 = vsel %vm84, %v82, %v79
    %v86 = vadd.f32 %v76, 1.0
    %v87 = vlog2.pop %v86
    %v88 = vmul.f32 %v87, 0.6931472
    %v89 = vmul.f32 -0.5, %v76
    %v90 = vadd.f32 %v89, 1.0
    %v91 = vmul.f32 %v90, %v76
    %v92 = vand.u32 2147483647, %v76
    %vm93 = vcmp.lt.f32.partialorder %v92, 0.0004427343
    %v94 = vsel %vm93, %v91, %v88
    %v95 = vadd.f32 %v67, %v85
    %v96 = vadd.f32 %v68, %v94
    %v97 = vsub.f32 %v59, %v61
    %v98 = vsub.f32 %v60, %v62
    %v99 = vmul.f32 %v97, %v97
    %v100 = vmul.f32 %v98, %v98
    %v101 = vand.u32 2147483647, %v97
    %v102 = vand.u32 2147483647, %v98
    %v103 = vld [vmem:[#allocation7] sm:$0xff]
    %v104 = vadd.f32 %v95, %v96
    %v105 = vadd.f32 %v103, %v104
    %106 = vst [vmem:[#allocation7] sm:$0xff] %v105
    %s107 = scalar_lea.vmem [#allocation7], 8
    %v108 = vld [vmem:[%s107] sm:$0xff]
    %v109 = vadd.f32 %v99, %v100
    %v110 = vadd.f32 %v108, %v109
    %111 = vst [vmem:[%s107] sm:$0xff] %v110
    %s112 = scalar_lea.vmem [#allocation7], 16
    %v113 = vld [vmem:[%s112] sm:$0xff]
    %v114 = vadd.f32 %v101, %v102
    %v115 = vadd.f32 %v113, %v114
    %116 = vst [vmem:[%s112] sm:$0xff] %v115
    // Predicated region
    $region22: #{tpu_custom_call.1} parent=1 // pred_check
      _
    $region23: #{tpu_custom_call.1} parent=1 // pred_check_branch
      %118 = sbr.rel (0) target = $region25
    $region24: #{tpu_custom_call.1} parent=1 // pred_region
      %s120 = ssub.s32 384, 384
      %121 = vsyncadd [#allocation4], %s120
      %s122 = sshll.u32 [#allocation7], 4
      %s123 = int_to_ptr.vmem [resolvable:$true] %s122
      %128 = dma.vmem_to_hbm [thread:$0]  %s123, 384, %s2, [#allocation4], 128, 128, 8
    $region25: #{tpu_custom_call.1} parent=1 // pred_fallthru
      _
    // Predicated region
    $region26: #{tpu_custom_call.1} parent=1 // pred_check
      _
    $region27: #{tpu_custom_call.1} parent=1 // pred_check_branch
      %130 = sbr.rel (0) target = $region29
    $region28: #{tpu_custom_call.1} parent=1 // pred_region
      %131 = dma.done [#allocation4], 384
    $region29: #{tpu_custom_call.1} parent=1 // pred_fallthru
      _
    %132 = vsyncpa [#allocation3], 1
    %133 = vsyncpa [#allocation6], 1
    %134 = vsyncpa [#allocation4], 1

</llo_original>
